<compile_context>
chip_gen: v5e
topology: v5e:2x2
jax: 0.10.0
libtpu: 0.0.40
codegen_flags: <defaults>
</compile_context>

<pallas_src>
import functools
import math

import jax
import jax.numpy as jnp
import numpy as np
from jax.experimental import pallas as pl
from jax.experimental.pallas import tpu as pltpu

NEG_SLOPE = 0.2
FUSED_LRELU_GAIN = math.sqrt(2.0)


def _round_up(x, m):
    return ((x + m - 1) // m) * m


def _divisor_tile(padded_dim, granule, max_tile):
    """Largest multiple of `granule` that divides `padded_dim` and is <= max_tile."""
    best = granule
    t = granule
    limit = min(max_tile, padded_dim)
    while t <= limit:
        if padded_dim % t == 0:
            best = t
        t += granule
    return best


def _choose_tile(padded_dim, granule, max_tile):
    """Tile for a dim already padded to `granule`. Minimizes extra padding first, then
    grid-step count. Never blows the array up to a large tile multiple."""
    max_tile = max(granule, (max_tile // granule) * granule)
    if padded_dim <= max_tile:
        return padded_dim
    floor = max(granule, (max_tile // 4 // granule) * granule)
    best_key, best_t = None, granule
    t = floor
    while t <= max_tile:
        padded = _round_up(padded_dim, t)
        key = (padded - padded_dim, padded // t)   # (extra padding, #tiles)
        if best_key is None or key < best_key:
            best_key, best_t = key, t
        t += granule
    return best_t


# ----------------------------------------------------------------------------
# Pallas kernels
# ----------------------------------------------------------------------------

def _equal_linear_kernel_2d(x_ref, w_ref, b_ref, o_ref, *, activation):
    """Single-K-tile path: whole reduction in one MXU dot; fused epilogue."""
    y = jnp.dot(x_ref[...], w_ref[...], preferred_element_type=jnp.float32)
    y = y + b_ref[...]                      # bias already pre-scaled by lr_mul
    if activation:
        y = jnp.where(y > 0, y, NEG_SLOPE * y) * FUSED_LRELU_GAIN
    o_ref[...] = y.astype(o_ref.dtype)


def _equal_linear_kernel_3d(x_ref, w_ref, b_ref, o_ref, acc_ref, *, activation):
    """Fallback for very large K: reduction grid axis with persistent f32 accumulator."""
    k = pl.program_id(2)

    @pl.when(k == 0)
    def _():
        acc_ref[...] = jnp.zeros_like(acc_ref)

    acc_ref[...] += jnp.dot(x_ref[...], w_ref[...],
                            preferred_element_type=jnp.float32)

    @pl.when(k == pl.num_programs(2) - 1)
    def _():
        y = acc_ref[...] + b_ref[...]
        if activation:
            y = jnp.where(y > 0, y, NEG_SLOPE * y) * FUSED_LRELU_GAIN
        o_ref[...] = y.astype(o_ref.dtype)


# ----------------------------------------------------------------------------
# Parameter prep (hoisted out of the forward hot path)
# ----------------------------------------------------------------------------

def prepare_equal_linear_params(weight, bias, *, lr_mul=1.0,
                                compute_dtype=jnp.bfloat16):
    """One-time prep: fold the equalized-lr scale into the weight, transpose to (K, N),
    pad K/N to the 128-lane granule, cast to the MXU compute dtype, pre-scale bias."""
    out_dim, in_dim = weight.shape
    scale = (1.0 / math.sqrt(in_dim)) * lr_mul
    Kp = _round_up(in_dim, 128)
    Np = _round_up(out_dim, 128)

    wt = (weight.astype(jnp.float32) * scale).T            # (K, N), scale folded in
    if (in_dim, out_dim) != (Kp, Np):
        wt = jnp.pad(wt, ((0, Kp - in_dim), (0, Np - out_dim)))
    wt = wt.astype(compute_dtype)

    if bias is None:
        b = jnp.zeros((1, Np), jnp.float32)
    else:
        b = (bias.astype(jnp.float32) * lr_mul).reshape(1, out_dim)
        if out_dim != Np:
            b = jnp.pad(b, ((0, 0), (0, Np - out_dim)))

    return {"wt": wt, "bias": b, "in_dim": in_dim, "out_dim": out_dim}


# ----------------------------------------------------------------------------
# Forward
# ----------------------------------------------------------------------------

def equal_linear_apply(x, params, *, activation=None,
                       tm_max=256, tn_max=256, tk_max=512, out_dtype=None):
    wt, b = params["wt"], params["bias"]
    in_dim, out_dim = params["in_dim"], params["out_dim"]
    Kp, Np = wt.shape
    compute_dtype = wt.dtype
    if out_dtype is None:
        out_dtype = x.dtype

    leading = x.shape[:-1]
    x2 = x.reshape(-1, in_dim)
    M = x2.shape[0]

    m_granule = 16 if compute_dtype == jnp.bfloat16 else 8
    Mp = _round_up(M, m_granule)

    # Tiles: N/K tiles must divide the (already-prepped) padded weight dims; the M tile
    # may add a little extra row padding (chosen to minimize it).
    tn = _divisor_tile(Np, 128, tn_max)
    single_k = Kp <= tk_max
    tk = Kp if single_k else _divisor_tile(Kp, 128, tk_max)
    tm = _choose_tile(Mp, m_granule, tm_max)
    Mp = _round_up(Mp, tm)

    # Cast / pad x only when actually needed (skip extra HBM round-trips otherwise).
    if x2.dtype != compute_dtype:
        x2 = x2.astype(compute_dtype)
    if (M, in_dim) != (Mp, Kp):
        x2 = jnp.pad(x2, ((0, Mp - M), (0, Kp - in_dim)))

    gM, gN = Mp // tm, Np // tn
    in_bytes = jnp.dtype(compute_dtype).itemsize
    out_bytes = jnp.dtype(out_dtype).itemsize

    # Explicit scoped-VMEM budget: double-buffered inputs/output + accumulator.
    vmem_est = 2 * (tm * tk * in_bytes + tk * tn * in_bytes + tn * 4
                    + tm * tn * out_bytes)
    if not single_k:
        vmem_est += tm * tn * 4
    vmem_limit = int(min(max(2 * vmem_est, 8 << 20), 48 << 20))

    if single_k:
        kernel = functools.partial(_equal_linear_kernel_2d,
                                   activation=bool(activation))
        # Grid order: put N outer (weight tile resident across M steps) when that
        # minimizes re-streamed HBM bytes; otherwise M outer.
        x_bytes = Mp * Kp * in_bytes
        w_bytes = Kp * Np * in_bytes
        n_outer = (gN - 1) * x_bytes < (gM - 1) * w_bytes
        if n_outer:
            grid = (gN, gM)
            x_map = lambda j, i: (i, 0)
            w_map = lambda j, i: (0, j)
            b_map = lambda j, i: (0, j)
            o_map = lambda j, i: (i, j)
        else:
            grid = (gM, gN)
            x_map = lambda i, j: (i, 0)
            w_map = lambda i, j: (0, j)
            b_map = lambda i, j: (0, j)
            o_map = lambda i, j: (i, j)

        out = pl.pallas_call(
            kernel,
            out_shape=jax.ShapeDtypeStruct((Mp, Np), out_dtype),
            grid=grid,
            in_specs=[
                pl.BlockSpec((tm, Kp), x_map),   # x tile (bf16)
                pl.BlockSpec((Kp, tn), w_map),   # (weight*scale).T tile (bf16)
                pl.BlockSpec((1, tn), b_map),    # bias*lr_mul tile (f32)
            ],
            out_specs=pl.BlockSpec((tm, tn), o_map),
            compiler_params=pltpu.CompilerParams(
                dimension_semantics=("parallel", "parallel"),
                vmem_limit_bytes=vmem_limit),
        )(x2, wt, b)
    else:
        kernel = functools.partial(_equal_linear_kernel_3d,
                                   activation=bool(activation))
        out = pl.pallas_call(
            kernel,
            out_shape=jax.ShapeDtypeStruct((Mp, Np), out_dtype),
            grid=(gM, gN, Kp // tk),
            in_specs=[
                pl.BlockSpec((tm, tk), lambda i, j, k: (i, k)),
                pl.BlockSpec((tk, tn), lambda i, j, k: (k, j)),
                pl.BlockSpec((1, tn), lambda i, j, k: (0, j)),
            ],
            out_specs=pl.BlockSpec((tm, tn), lambda i, j, k: (i, j)),
            scratch_shapes=[pltpu.VMEM((tm, tn), jnp.float32)],
            compiler_params=pltpu.CompilerParams(
                dimension_semantics=("parallel", "parallel", "arbitrary"),
                vmem_limit_bytes=vmem_limit),
        )(x2, wt, b)

    out = out[:M, :out_dim]
    return out.reshape(*leading, out_dim)


def equal_linear(x, weight, bias, *, lr_mul=1.0, activation=None, **kw):
    """Convenience wrapper (prep + apply). Prefer prepare_* once + apply per-call."""
    params = prepare_equal_linear_params(weight, bias, lr_mul=lr_mul)
    return equal_linear_apply(x, params, activation=activation, **kw)


# ----------------------------------------------------------------------------
# Pure-JAX reference (mirrors the PyTorch module exactly)
# ----------------------------------------------------------------------------

def equal_linear_ref(x, weight, bias, *, lr_mul=1.0, activation=None):
    scale = (1.0 / math.sqrt(weight.shape[1])) * lr_mul
    out = jnp.einsum('...k,nk->...n', x.astype(jnp.float32),
                     weight.astype(jnp.float32) * scale, precision='highest')
    b = bias.astype(jnp.float32) * lr_mul
    if activation:
        out = out + b
        out = jnp.where(out > 0, out, NEG_SLOPE * out) * FUSED_LRELU_GAIN
    else:
        out = out + b
    return out


def init_equal_linear(key, in_dim, out_dim, *, lr_mul=1.0, bias_init=0.0):
    # Matches: weight = randn(out_dim, in_dim) / lr_mul ; bias = zeros.fill_(bias_init)
    weight = jax.random.normal(key, (out_dim, in_dim), dtype=jnp.float32) / lr_mul
    bias = jnp.full((out_dim,), bias_init, dtype=jnp.float32)
    return weight, bias


# ----------------------------------------------------------------------------
# Main
# ----------------------------------------------------------------------------

if __name__ == "__main__":
    key = jax.random.PRNGKey(0)
    k1, k2, k3, k4, k5, k6 = jax.random.split(key, 6)

    # Case 1: small mapping-network-style layer WITH fused leaky relu activation.
    # Params are prepped once (hoisted), then applied.
    B, in_dim, out_dim = 2, 32, 48
    w1, b1 = init_equal_linear(k1, in_dim, out_dim, lr_mul=0.01, bias_init=0.0)
    p1 = prepare_equal_linear_params(w1, b1, lr_mul=0.01)
    x1 = jax.random.normal(k2, (B, in_dim), dtype=jnp.float32)
    y1 = equal_linear_apply(x1, p1, activation='fused_lrelu')
    y1_ref = equal_linear_ref(x1, w1, b1, lr_mul=0.01, activation='fused_lrelu')

    # Case 2: plain linear (no activation), nonzero bias_init, batched 3-D input.
    w2, b2 = init_equal_linear(k3, in_dim, out_dim, lr_mul=1.0, bias_init=0.2)
    p2 = prepare_equal_linear_params(w2, b2, lr_mul=1.0)
    x2 = jax.random.normal(k4, (B, 8, in_dim), dtype=jnp.float32)
    y2 = equal_linear_apply(x2, p2, activation=None)
    y2_ref = equal_linear_ref(x2, w2, b2, lr_mul=1.0, activation=None)

    # Case 3: larger non-power-of-two shapes; small tk_max forces the multi-K
    # reduction-grid kernel and exercises the tile-selection / padding logic.
    M3, K3, N3 = 260, 384, 300
    w3, b3 = init_equal_linear(k5, K3, N3, lr_mul=1.0, bias_init=0.0)
    p3 = prepare_equal_linear_params(w3, b3, lr_mul=1.0)
    x3 = jax.random.normal(k6, (M3, K3), dtype=jnp.float32)
    y3 = equal_linear_apply(x3, p3, activation='fused_lrelu',
                            tm_max=128, tn_max=128, tk_max=128)
    y3_ref = equal_linear_ref(x3, w3, b3, lr_mul=1.0, activation='fused_lrelu')

    # Case 4: same shapes via the single-K fast path (default tile maxes).
    y4 = equal_linear_apply(x3, p3, activation='fused_lrelu')

    jax.block_until_ready((y1, y2, y3, y4))

    assert y1.shape == (B, out_dim), y1.shape
    assert y2.shape == (B, 8, out_dim), y2.shape
    assert y3.shape == (M3, N3), y3.shape
    assert y4.shape == (M3, N3), y4.shape

    np.testing.assert_allclose(np.asarray(y1), np.asarray(y1_ref), rtol=2e-2, atol=2e-2)
    np.testing.assert_allclose(np.asarray(y2), np.asarray(y2_ref), rtol=2e-2, atol=2e-2)
    np.testing.assert_allclose(np.asarray(y3), np.asarray(y3_ref), rtol=2e-2, atol=2e-2)
    np.testing.assert_allclose(np.asarray(y4), np.asarray(y3_ref), rtol=2e-2, atol=2e-2)
    assert bool(jnp.all(jnp.isfinite(y1)))
    assert bool(jnp.all(jnp.isfinite(y2)))
    assert bool(jnp.all(jnp.isfinite(y3)))
    assert bool(jnp.all(jnp.isfinite(y4)))

    print("KERNEL_OK")
</pallas_src>

<mosaic_0001>
module attributes {stable_mosaic.version = 11 : i64} {
  func.func @_equal_linear_kernel_2d(%arg0: i32, %arg1: i32, %arg2: memref<16x128xbf16, #tpu.memory_space<vmem>>, %arg3: memref<128x128xbf16, #tpu.memory_space<vmem>>, %arg4: memref<1x128xf32, #tpu.memory_space<vmem>>, %arg5: memref<16x128xf32, #tpu.memory_space<vmem>>) attributes {dimension_semantics = [#tpu.dimension_semantics<parallel>, #tpu.dimension_semantics<parallel>], iteration_bounds = array<i64: 1, 1>, scalar_prefetch = 0 : i64, scratch_operands = 0 : i64, tpu.core_type = #tpu.core_type<tc>, window_params = [{transform_indices = @transform_0, window_bounds = array<i64: 16, 128>}, {transform_indices = @transform_1, window_bounds = array<i64: 128, 128>}, {transform_indices = @transform_2, window_bounds = array<i64: 1, 128>}, {transform_indices = @transform_3, window_bounds = array<i64: 16, 128>}]} {
    %c0 = arith.constant 0 : index
    %c0_0 = arith.constant 0 : index
    %0 = vector.load %arg2[%c0, %c0_0] : memref<16x128xbf16, #tpu.memory_space<vmem>>, vector<16x128xbf16>
    %c0_1 = arith.constant 0 : index
    %c0_2 = arith.constant 0 : index
    %1 = vector.load %arg3[%c0_1, %c0_2] : memref<128x128xbf16, #tpu.memory_space<vmem>>, vector<128x128xbf16>
    %cst = arith.constant dense<0.000000e+00> : vector<16x128xf32>
    %2 = tpu.matmul %0, %1, %cst {dimension_numbers = #tpu.dot_dimension_numbers<[1], [0], [0], [1], [0, 0, 1, 1], [], []>} : vector<16x128xbf16>, vector<128x128xbf16>, vector<16x128xf32> -> vector<16x128xf32>
    %c0_3 = arith.constant 0 : index
    %c0_4 = arith.constant 0 : index
    %3 = vector.load %arg4[%c0_3, %c0_4] : memref<1x128xf32, #tpu.memory_space<vmem>>, vector<1x128xf32>
    %4 = vector.broadcast %3 : vector<1x128xf32> to vector<16x128xf32>
    %5 = arith.addf %2, %4 : vector<16x128xf32>
    %cst_5 = arith.constant 0.000000e+00 : f32
    %6 = vector.broadcast %cst_5 : f32 to vector<16x128xf32>
    %7 = arith.cmpf ogt, %5, %6 : vector<16x128xf32>
    %cst_6 = arith.constant 2.000000e-01 : f32
    %8 = vector.broadcast %cst_6 : f32 to vector<16x128xf32>
    %9 = arith.mulf %8, %5 : vector<16x128xf32>
    %10 = arith.select %7, %5, %9 : vector<16x128xi1>, vector<16x128xf32>
    %cst_7 = arith.constant 1.41421354 : f32
    %11 = vector.broadcast %cst_7 : f32 to vector<16x128xf32>
    %12 = arith.mulf %10, %11 : vector<16x128xf32>
    %c0_8 = arith.constant 0 : index
    %c0_9 = arith.constant 0 : index
    %13 = vector.load %arg5[%c0_8, %c0_9] : memref<16x128xf32, #tpu.memory_space<vmem>>, vector<16x128xf32>
    tpu.vector_store %arg5[%c0_8, %c0_9], %12 {strides = array<i32>} : memref<16x128xf32, #tpu.memory_space<vmem>>, vector<16x128xf32>,
    return
  }
  func.func @transform_0(%arg0: i32, %arg1: i32) -> (i32, i32) {
    %c0_i32 = arith.constant 0 : i32
    %c0_i32_0 = arith.constant 0 : i32
    return %arg0, %c0_i32 : i32, i32
  }
  func.func @transform_1(%arg0: i32, %arg1: i32) -> (i32, i32) {
    %c0_i32 = arith.constant 0 : i32
    %c0_i32_0 = arith.constant 0 : i32
    return %c0_i32, %arg1 : i32, i32
  }
  func.func @transform_2(%arg0: i32, %arg1: i32) -> (i32, i32) {
    %c0_i32 = arith.constant 0 : i32
    %c0_i32_0 = arith.constant 0 : i32
    return %c0_i32, %arg1 : i32, i32
  }
  func.func @transform_3(%arg0: i32, %arg1: i32) -> (i32, i32) {
    %c0_i32 = arith.constant 0 : i32
    return %arg0, %arg1 : i32, i32
  }
}

</mosaic_0001>

<llo_original>
// kernel: tpu_custom_call.1
$region0: #{tpu_custom_call.1}
  #allocation0 [shape = 'u32[]', space=smem, size = 0x4, offset = 0x4, fixed_abs, tag = 'smem constant byte address 0x4 - core index']
  #allocation1 [shape = 'u32[72,128]{1,0:T(1,128)}', space=vmem, size = 0x9000, scoped, tag = 'internal scratch']
  %s0 = inlined_call_operand.hbm [shape: bf16[16,128], index: 0, kind: input, shape index: {}]
  %s1 = inlined_call_operand.hbm [shape: bf16[128,128], index: 1, kind: input, shape index: {}]
  %s2 = inlined_call_operand.vmem [shape: f32[1,128], index: 2, kind: input, shape index: {}]
  %s3 = inlined_call_operand.hbm [shape: f32[16,128], index: 3, kind: output, shape index: {}]
  %s4 = sld [smem:[#allocation0]]
  $region30: #{tpu_custom_call.1} parent=0
    _
  %s6 = ssub.s32 1, %s4
  %s7 = scalar_select 0, %s6, %s4
  $region1: #{tpu_custom_call.1} parent=0
    #allocation2 [shape = 'u8[4096]{0}', space=vmem, size = 0x1000, scoped, tag = 'input window, operand 0, single buffered']
    #allocation3 [shape = 's32[1]{0}', space=sflag, size = 0x4, scoped, tag = 'scoped memory for tpu_custom_call.1']
    #allocation4 [shape = 's32[1]{0}', space=sflag, size = 0x4, scoped, tag = 'scoped memory for tpu_custom_call.1']
    #allocation5 [shape = 'u8[32768]{0}', space=vmem, size = 0x8000, scoped, tag = 'input window, operand 1, single buffered']
    #allocation6 [shape = 's32[1]{0}', space=sflag, size = 0x4, scoped, tag = 'scoped memory for tpu_custom_call.1']
    #allocation7 [shape = 'u8[8192]{0}', space=vmem, size = 0x2000, scoped, tag = 'output window, operand 0, single buffered']
    %8 = vsyncpa [#allocation3], 0
    %9 = vsyncpa [#allocation6], 0
    %10 = vsyncpa [#allocation4], 0
    // Predicated region
    $region2: #{tpu_custom_call.1} parent=1 // pred_check
      _
    $region3: #{tpu_custom_call.1} parent=1 // pred_check_branch
      %12 = sbr.rel (0) target = $region5
    $region4: #{tpu_custom_call.1} parent=1 // pred_region
      %14 = vsyncadd [#allocation3], 0
      %s15 = sshll.u32 %s0, 4
      %s16 = int_to_ptr.hbm [resolvable:$true] %s15
      %s17 = sshll.u32 [#allocation2], 4
      %s18 = int_to_ptr.vmem [resolvable:$true] %s17
      %23 = dma.hbm_to_vmem [thread:$0]  %s16, 128, %s18, [#allocation3], 64, 64, 4
    $region5: #{tpu_custom_call.1} parent=1 // pred_fallthru
      _
    // Predicated region
    $region6: #{tpu_custom_call.1} parent=1 // pred_check
      _
    $region7: #{tpu_custom_call.1} parent=1 // pred_check_branch
      %25 = sbr.rel (0) target = $region9
    $region8: #{tpu_custom_call.1} parent=1 // pred_region
      %27 = vsyncadd [#allocation6], 0
      %s28 = sshll.u32 %s1, 4
      %s29 = int_to_ptr.hbm [resolvable:$true] %s28
      %s30 = sshll.u32 [#allocation5], 4
      %s31 = int_to_ptr.vmem [resolvable:$true] %s30
      %36 = dma.hbm_to_vmem [thread:$0]  %s29, 1024, %s31, [#allocation6], 64, 64, 4
    $region9: #{tpu_custom_call.1} parent=1 // pred_fallthru
      _
    // Predicated region
    $region10: #{tpu_custom_call.1} parent=1 // pred_check
      _
    $region11: #{tpu_custom_call.1} parent=1 // pred_check_branch
      %38 = sbr.rel (0) target = $region13
    $region12: #{tpu_custom_call.1} parent=1 // pred_region
      _
    $region13: #{tpu_custom_call.1} parent=1 // pred_fallthru
      _
    // Predicated region
    $region14: #{tpu_custom_call.1} parent=1 // pred_check
      _
    $region15: #{tpu_custom_call.1} parent=1 // pred_check_branch
      %40 = sbr.rel (0) target = $region17
    $region16: #{tpu_custom_call.1} parent=1 // pred_region
      %42 = dma.done [#allocation3], 128
    $region17: #{tpu_custom_call.1} parent=1 // pred_fallthru
      _
    // Predicated region
    $region18: #{tpu_custom_call.1} parent=1 // pred_check
      _
    $region19: #{tpu_custom_call.1} parent=1 // pred_check_branch
      %44 = sbr.rel (0) target = $region21
    $region20: #{tpu_custom_call.1} parent=1 // pred_region
      %46 = dma.done [#allocation6], 1024
    $region21: #{tpu_custom_call.1} parent=1 // pred_fallthru
      _
    %v47 = vld [vmem:[#allocation2] sm:$0xf]
    %v48 = vld [vmem:[#allocation2 + $0x4] sm:$0xf]
    %v49 = vld [vmem:[#allocation5] sm:$0xf]
    %v50 = vld [vmem:[#allocation5 + $0x4] sm:$0xf]
    %v51 = vld [vmem:[#allocation5 + $0x8] sm:$0xf]
    %v52 = vld [vmem:[#allocation5 + $0xc] sm:$0xf]
    %v53 = vld [vmem:[#allocation5 + $0x10] sm:$0xf]
    %v54 = vld [vmem:[#allocation5 + $0x14] sm:$0xf]
    %v55 = vld [vmem:[#allocation5 + $0x18] sm:$0xf]
    %v56 = vld [vmem:[#allocation5 + $0x1c] sm:$0xf]
    %v57 = vld [vmem:[#allocation5 + $0x20] sm:$0xf]
    %v58 = vld [vmem:[#allocation5 + $0x24] sm:$0xf]
    %v59 = vld [vmem:[#allocation5 + $0x28] sm:$0xf]
    %v60 = vld [vmem:[#allocation5 + $0x2c] sm:$0xf]
    %v61 = vld [vmem:[#allocation5 + $0x30] sm:$0xf]
    %v62 = vld [vmem:[#allocation5 + $0x34] sm:$0xf]
    %v63 = vld [vmem:[#allocation5 + $0x38] sm:$0xf]
    %v64 = vld [vmem:[#allocation5 + $0x3c] sm:$0xf]
    %v65 = vld [vmem:[%s2] sm:$0x1]
    %v67 = vperm.slane %v65, 0
    %v71 = vunpack.c.l.b16 %v47
    %v72 = vunpack.c.l.b16 %v48
    %v73 = vpack.c.b16 %v72, %v71
    %v91 = vunpack.c.l.b16 %v49
    %v92 = vunpack.c.l.b16 %v50
    %v93 = vunpack.c.l.b16 %v51
    %v94 = vunpack.c.l.b16 %v52
    %v95 = vunpack.c.l.b16 %v53
    %v96 = vunpack.c.l.b16 %v54
    %v97 = vunpack.c.l.b16 %v55
    %v98 = vunpack.c.l.b16 %v56
    %v99 = vunpack.c.l.b16 %v57
    %v100 = vunpack.c.l.b16 %v58
    %v101 = vunpack.c.l.b16 %v59
    %v102 = vunpack.c.l.b16 %v60
    %v103 = vunpack.c.l.b16 %v61
    %v104 = vunpack.c.l.b16 %v62
    %v105 = vunpack.c.l.b16 %v63
    %v106 = vunpack.c.l.b16 %v64
    %v107 = vpack.c.b16 %v92, %v91
    %v108 = vpack.c.b16 %v94, %v93
    %v109 = vpack.c.b16 %v96, %v95
    %v110 = vpack.c.b16 %v98, %v97
    %v111 = vpack.c.b16 %v100, %v99
    %v112 = vpack.c.b16 %v102, %v101
    %v113 = vpack.c.b16 %v104, %v103
    %v114 = vpack.c.b16 %v106, %v105
    %123 = vmatpush.bf16.msra.mxu0 %v114
    %124 = vmatpush.bf16.msra.mxu0 %v113
    %125 = vmatpush.bf16.msra.mxu0 %v112
    %126 = vmatpush.bf16.msra.mxu0 %v111
    %127 = vmatpush.bf16.msra.mxu0 %v110
    %128 = vmatpush.bf16.msra.mxu0 %v109
    %129 = vmatpush.bf16.msra.mxu0 %v108
    %130 = vmatpush.bf16.msra.mxu0 %v107
    %131 = vmatmul.bf16.gmra.mxu0 %v73
    %v132 = vpop.f32.mrf.mxu0
    %v133 = vadd.f32 %v67, %v132
    %v134 = vpop.f32.mrf.mxu0
    %v135 = vadd.f32 %v67, %v134
    %136 = vdwg.mxu0
    %vm137 = vcmp.gt.f32.partialorder %v133, 0.0
    %vm138 = vcmp.gt.f32.partialorder %v135, 0.0
    %v139 = vmul.f32 %v133, 0.2
    %v140 = vmul.f32 %v135, 0.2
    %v141 = vsel %vm137, %v133, %v139
    %v142 = vsel %vm138, %v135, %v140
    %v143 = vmul.f32 %v141, 1.4142135
    %v144 = vmul.f32 %v142, 1.4142135
    %145 = vst [vmem:[#allocation7] sm:$0xff] %v143
    %146 = vst [vmem:[#allocation7 + $0x8] sm:$0xff] %v144
    // Predicated region
    $region22: #{tpu_custom_call.1} parent=1 // pred_check
      _
    $region23: #{tpu_custom_call.1} parent=1 // pred_check_branch
      %148 = sbr.rel (0) target = $region25
    $region24: #{tpu_custom_call.1} parent=1 // pred_region
      %150 = vsyncadd [#allocation4], 0
      %s151 = sshll.u32 [#allocation7], 4
      %s152 = int_to_ptr.vmem [resolvable:$true] %s151
      %s153 = sshll.u32 %s3, 4
      %s154 = int_to_ptr.hbm [resolvable:$true] %s153
      %159 = dma.vmem_to_hbm [thread:$0]  %s152, 256, %s154, [#allocation4], 128, 128, 8
    $region25: #{tpu_custom_call.1} parent=1 // pred_fallthru
      _
    // Predicated region
    $region26: #{tpu_custom_call.1} parent=1 // pred_check
      _
    $region27: #{tpu_custom_call.1} parent=1 // pred_check_branch
      %161 = sbr.rel (0) target = $region29
    $region28: #{tpu_custom_call.1} parent=1 // pred_region
      %163 = dma.done [#allocation4], 256
    $region29: #{tpu_custom_call.1} parent=1 // pred_fallthru
      _
    %164 = vsyncpa [#allocation3], 1
    %165 = vsyncpa [#allocation6], 1
    %166 = vsyncpa [#allocation4], 1

</llo_original>
